<compile_context>
chip_gen: v6e
topology: v6e:2x2x1
jax: 0.10.0
libtpu: 0.0.40
codegen_flags: <defaults>
</compile_context>

<pallas_src>
import functools

import jax
import jax.numpy as jnp
from jax.experimental import pallas as pl
from jax.experimental.pallas import tpu as pltpu


_ROW_ALIGN = 16  # sublane alignment covering bf16 (16) and f32 (8) tiles


def _round_up(x, m):
    return (x + m - 1) // m * m


def _choose_block_n(n, block_n):
    """Row-tile size: aligned, <= block_n, and >= 2 grid steps whenever the row
    count allows it (so a v7x megacore can shard the grid across both TCs)."""
    block_n = max(_ROW_ALIGN, _round_up(block_n, _ROW_ALIGN))
    if n <= _ROW_ALIGN:
        return n                      # single block; full-array-dim exception
    if n <= 2 * block_n:
        return min(block_n, _round_up(pl.cdiv(n, 2), _ROW_ALIGN))
    return block_n


def _sage_gcn_kernel(x_ref, w_ref, o_ref):
    """One row tile of relu([src||nei] @ W_packed) with f32 MXU accumulation."""
    acc = jnp.dot(x_ref[...], w_ref[...], preferred_element_type=jnp.float32)
    o_ref[...] = jnp.maximum(acc, 0.0).astype(o_ref.dtype)


def _sage_gcn_pallas(x, w_packed, *, block_n, out_dtype):
    n, d_in = x.shape
    d_in_w, d_out2 = w_packed.shape
    assert d_in == d_in_w, (d_in, d_in_w)

    bn = _choose_block_n(n, block_n)
    grid = (pl.cdiv(n, bn),)

    in_bytes = jnp.dtype(x.dtype).itemsize
    out_bytes = jnp.dtype(out_dtype).itemsize
    cost = pl.CostEstimate(
        flops=2 * n * d_in * d_out2,
        transcendentals=0,
        bytes_accessed=int(n * d_in * in_bytes
                           + d_in * d_out2 * in_bytes
                           + n * d_out2 * out_bytes),
    )

    return pl.pallas_call(
        _sage_gcn_kernel,
        out_shape=jax.ShapeDtypeStruct((n, d_out2), out_dtype),
        grid_spec=pltpu.PrefetchScalarGridSpec(
            num_scalar_prefetch=0,
            grid=grid,
            in_specs=[
                # Row-tiled activations: auto-pipelined HBM->VMEM DMA.
                pl.BlockSpec((bn, d_in), lambda i: (i, 0)),
                # Packed weight: constant index_map -> stays resident in VMEM.
                # TODO(synk): pipeline_mode=pl.Buffered(1) once single-buffered
                # weight residency matters (weights are tiny at GCN-scale dims).
                pl.BlockSpec((d_in, d_out2), lambda i: (0, 0)),
            ],
            out_specs=pl.BlockSpec((bn, d_out2), lambda i: (i, 0)),
        ),
        compiler_params=pltpu.CompilerParams(
            dimension_semantics=("parallel",),
        ),
        cost_estimate=cost,
    )(x, w_packed)


def sage_gcn_batched_pallas(pairs, layer_params, *, block_n=1024,
                            io_dtype=jnp.bfloat16, out_dtype=jnp.float32):
    """Run ONE fused SageGCN pallas_call over several (src, nei) inputs that
    share this layer's weights.  Returns one output per pair (original leading
    dims, trailing 2*d_out)."""
    w_packed = layer_params["w_packed"].astype(io_dtype)
    d_out2 = w_packed.shape[1]

    xs, metas = [], []
    for src, nei in pairs:
        lead = src.shape[:-1]
        assert nei.shape[:-1] == lead, "leading dims of src/nei must match"
        n_i = 1
        for d in lead:
            n_i *= d
        metas.append((lead, n_i))
        xs.append(jnp.concatenate(
            [src.reshape(n_i, src.shape[-1]), nei.reshape(n_i, nei.shape[-1])],
            axis=-1))
    x = jnp.concatenate(xs, axis=0).astype(io_dtype)

    out = _sage_gcn_pallas(x, w_packed, block_n=block_n, out_dtype=out_dtype)

    results, off = [], 0
    for lead, n_i in metas:
        results.append(out[off:off + n_i].reshape(*lead, d_out2))
        off += n_i
    return results


def sage_gcn_batched_reference(pairs, layer_params, *, io_dtype=jnp.bfloat16,
                               out_dtype=jnp.float32):
    """Pure-JAX reference with the same dtype policy (bf16 in, f32 accumulate)."""
    w_src = layer_params["w_src"].astype(io_dtype)
    w_nei = layer_params["w_nei"].astype(io_dtype)
    outs = []
    for src, nei in pairs:
        e_src = jnp.dot(src.astype(io_dtype), w_src,
                        preferred_element_type=jnp.float32)
        e_nei = jnp.dot(nei.astype(io_dtype), w_nei,
                        preferred_element_type=jnp.float32)
        outs.append(jax.nn.relu(
            jnp.concatenate([e_src, e_nei], axis=-1)).astype(out_dtype))
    return outs


def gcn_forward(params, src_feats, src_hop1_feats, src_hop2_feats,
                dst_feats, dst_hop1_feats, dst_hop2_feats, *,
                src_dim, dst_dim, sage_batched):
    """Mirrors GCN.forward from the PyTorch spec (eval mode)."""
    # Neighbor means are cheap bandwidth ops; XLA fuses them with the concat/cast
    # that feeds the kernel.
    src_hop1_mean = jnp.mean(src_hop1_feats, axis=1)
    dst_hop1_mean = jnp.mean(dst_hop1_feats, axis=1)
    src_hop2_mean = jnp.mean(src_hop2_feats, axis=2)
    dst_hop2_mean = jnp.mean(dst_hop2_feats, axis=2)

    # Layer 1: the four SageGCN applications pair up by shared weights, so run
    # them as two row-batched kernels (bigger grids, weights DMA'd once each).
    src_feats_agg1, dst_hop1_agg1 = sage_batched(
        [(src_feats, src_hop1_mean),
         (dst_hop1_feats[..., :src_dim], dst_hop2_mean)],
        params["src_agg1"])
    dst_feats_agg1, src_hop1_agg1 = sage_batched(
        [(dst_feats, dst_hop1_mean),
         (src_hop1_feats[..., :dst_dim], src_hop2_mean)],
        params["dst_agg1"])

    src_agg1_mean = jnp.mean(src_hop1_agg1, axis=1)
    dst_agg1_mean = jnp.mean(dst_hop1_agg1, axis=1)

    # Layer 2: different weights per call, so two separate kernels.
    (src_feats_agg2,) = sage_batched([(src_feats_agg1, src_agg1_mean)],
                                     params["src_agg2"])
    (dst_feats_agg2,) = sage_batched([(dst_feats_agg1, dst_agg1_mean)],
                                     params["dst_agg2"])
    return src_feats_agg2, dst_feats_agg2


def init_gcn_params(key, src_dim, dst_dim, edge_dim, src_h1, dst_h1, embed_dim,
                    dtype=jnp.float32):
    """Kaiming-uniform-style init; weights stored as (in_features, out_features)."""
    ks = jax.random.split(key, 8)

    def kaiming(k, shape):
        bound = float(jnp.sqrt(6.0 / shape[0]))  # gain sqrt(2), fan_in = contraction
        return jax.random.uniform(k, shape, dtype, -bound, bound)

    # TODO(synk): the original PyTorch GCN sizes its layer-2 SageGCN weights as
    # (hidden_dim1, embed_dim), but each SageGCN *outputs* 2*output_dim (concat of
    # src & nei embeddings), so the reference module as written cannot run (also
    # the `nn.Prameter` typo).  Layer-2 weights here are sized to the actual
    # concatenated input widths so the forward is well-defined.  In particular
    # dst_agg2's neighbor input (dst_agg1_mean) has width 2*src_h1.
    return {
        "src_agg1": {"w_src": kaiming(ks[0], (src_dim, src_h1)),
                     "w_nei": kaiming(ks[1], (dst_dim + edge_dim, src_h1))},
        "dst_agg1": {"w_src": kaiming(ks[2], (dst_dim, dst_h1)),
                     "w_nei": kaiming(ks[3], (src_dim + edge_dim, dst_h1))},
        "src_agg2": {"w_src": kaiming(ks[4], (2 * src_h1, embed_dim)),
                     "w_nei": kaiming(ks[5], (2 * dst_h1, embed_dim))},
        "dst_agg2": {"w_src": kaiming(ks[6], (2 * dst_h1, embed_dim)),
                     "w_nei": kaiming(ks[7], (2 * src_h1, embed_dim))},
    }


def pack_sage_weights(w_src, w_nei, io_dtype=jnp.bfloat16):
    """Pack W_src / W_nei block-diagonally into (ds+dn, 2*d_out), done once."""
    ds, d_out = w_src.shape
    dn, d_out2 = w_nei.shape
    assert d_out == d_out2
    w = jnp.zeros((ds + dn, 2 * d_out), dtype=io_dtype)
    w = w.at[:ds, :d_out].set(w_src.astype(io_dtype))
    w = w.at[ds:, d_out:].set(w_nei.astype(io_dtype))
    return w


def pack_gcn_params(params, io_dtype=jnp.bfloat16):
    return {name: {**p, "w_packed": pack_sage_weights(p["w_src"], p["w_nei"],
                                                      io_dtype)}
            for name, p in params.items()}


if __name__ == "__main__":
    # Small shapes consistent with GCN.forward.
    SRC_DIM, DST_DIM, EDGE_DIM = 16, 16, 8
    SRC_H1, DST_H1, EMBED = 32, 32, 16
    B, N1, N2 = 4, 8, 4

    key = jax.random.PRNGKey(0)
    keys = jax.random.split(key, 7)
    src_feats = jax.random.normal(keys[0], (B, SRC_DIM), jnp.float32)
    src_hop1_feats = jax.random.normal(keys[1], (B, N1, DST_DIM + EDGE_DIM), jnp.float32)
    src_hop2_feats = jax.random.normal(keys[2], (B, N1, N2, SRC_DIM + EDGE_DIM), jnp.float32)
    dst_feats = jax.random.normal(keys[3], (B, DST_DIM), jnp.float32)
    dst_hop1_feats = jax.random.normal(keys[4], (B, N1, SRC_DIM + EDGE_DIM), jnp.float32)
    dst_hop2_feats = jax.random.normal(keys[5], (B, N1, N2, DST_DIM + EDGE_DIM), jnp.float32)

    params = init_gcn_params(keys[6], SRC_DIM, DST_DIM, EDGE_DIM, SRC_H1, DST_H1, EMBED)
    params = pack_gcn_params(params, io_dtype=jnp.bfloat16)  # one-time weight pack

    pallas_fwd = jax.jit(functools.partial(
        gcn_forward, src_dim=SRC_DIM, dst_dim=DST_DIM,
        sage_batched=sage_gcn_batched_pallas))
    src_out, dst_out = jax.block_until_ready(
        pallas_fwd(params, src_feats, src_hop1_feats, src_hop2_feats,
                   dst_feats, dst_hop1_feats, dst_hop2_feats)
    )

    ref_src, ref_dst = gcn_forward(
        params, src_feats, src_hop1_feats, src_hop2_feats,
        dst_feats, dst_hop1_feats, dst_hop2_feats,
        src_dim=SRC_DIM, dst_dim=DST_DIM,
        sage_batched=sage_gcn_batched_reference)

    assert src_out.shape == (B, 2 * EMBED) and dst_out.shape == (B, 2 * EMBED)
    assert jnp.allclose(src_out, ref_src, atol=5e-3, rtol=5e-3)
    assert jnp.allclose(dst_out, ref_dst, atol=5e-3, rtol=5e-3)

    print("KERNEL_OK")
</pallas_src>

<mosaic_0001>
module attributes {stable_mosaic.version = 11 : i64} {
  func.func @_sage_gcn_kernel(%arg0: i32, %arg1: memref<32x40xbf16, #tpu.memory_space<vmem>>, %arg2: memref<40x64xbf16, #tpu.memory_space<vmem>>, %arg3: memref<32x64xf32, #tpu.memory_space<vmem>>) attributes {dimension_semantics = [#tpu.dimension_semantics<parallel>], iteration_bounds = array<i64: 2>, scalar_prefetch = 0 : i64, scratch_operands = 0 : i64, tpu.core_type = #tpu.core_type<tc>, window_params = [{transform_indices = @transform_0, window_bounds = array<i64: 32, 40>}, {pipeline_mode = #tpu.pipeline_mode<synchronous>, transform_indices = @transform_1, window_bounds = array<i64: 40, 64>}, {transform_indices = @transform_2, window_bounds = array<i64: 32, 64>}]} {
    %c0 = arith.constant 0 : index
    %c0_0 = arith.constant 0 : index
    %0 = vector.load %arg1[%c0, %c0_0] : memref<32x40xbf16, #tpu.memory_space<vmem>>, vector<32x40xbf16>
    %c0_1 = arith.constant 0 : index
    %c0_2 = arith.constant 0 : index
    %1 = vector.load %arg2[%c0_1, %c0_2] : memref<40x64xbf16, #tpu.memory_space<vmem>>, vector<40x64xbf16>
    %cst = arith.constant dense<0.000000e+00> : vector<32x64xf32>
    %2 = tpu.matmul %0, %1, %cst {dimension_numbers = #tpu.dot_dimension_numbers<[1], [0], [0], [1], [0, 0, 1, 1], [], []>} : vector<32x40xbf16>, vector<40x64xbf16>, vector<32x64xf32> -> vector<32x64xf32>
    %cst_3 = arith.constant 0.000000e+00 : f32
    %3 = vector.broadcast %cst_3 : f32 to vector<32x64xf32>
    %4 = arith.maximumf %2, %3 : vector<32x64xf32>
    %c0_4 = arith.constant 0 : index
    %c0_5 = arith.constant 0 : index
    %5 = vector.load %arg3[%c0_4, %c0_5] : memref<32x64xf32, #tpu.memory_space<vmem>>, vector<32x64xf32>
    tpu.vector_store %arg3[%c0_4, %c0_5], %4 {strides = array<i32>} : memref<32x64xf32, #tpu.memory_space<vmem>>, vector<32x64xf32>,
    return
  }
  func.func @transform_0(%arg0: i32) -> (i32, i32) {
    %c0_i32 = arith.constant 0 : i32
    %c0_i32_0 = arith.constant 0 : i32
    return %arg0, %c0_i32 : i32, i32
  }
  func.func @transform_1(%arg0: i32) -> (i32, i32) {
    %c0_i32 = arith.constant 0 : i32
    %c0_i32_0 = arith.constant 0 : i32
    %c0_i32_1 = arith.constant 0 : i32
    return %c0_i32, %c0_i32_0 : i32, i32
  }
  func.func @transform_2(%arg0: i32) -> (i32, i32) {
    %c0_i32 = arith.constant 0 : i32
    %c0_i32_0 = arith.constant 0 : i32
    return %arg0, %c0_i32 : i32, i32
  }
}

module attributes {stable_mosaic.version = 11 : i64} {
  func.func @_sage_gcn_kernel(%arg0: i32, %arg1: memref<4x128xbf16, #tpu.memory_space<vmem>>, %arg2: memref<128x32xbf16, #tpu.memory_space<vmem>>, %arg3: memref<4x32xf32, #tpu.memory_space<vmem>>) attributes {dimension_semantics = [#tpu.dimension_semantics<parallel>], iteration_bounds = array<i64: 1>, scalar_prefetch = 0 : i64, scratch_operands = 0 : i64, tpu.core_type = #tpu.core_type<tc>, window_params = [{transform_indices = @transform_0, window_bounds = array<i64: 4, 128>}, {pipeline_mode = #tpu.pipeline_mode<synchronous>, transform_indices = @transform_1, window_bounds = array<i64: 128, 32>}, {transform_indices = @transform_2, window_bounds = array<i64: 4, 32>}]} {
    %c0 = arith.constant 0 : index
    %c0_0 = arith.constant 0 : index
    %0 = vector.load %arg1[%c0, %c0_0] : memref<4x128xbf16, #tpu.memory_space<vmem>>, vector<4x128xbf16>
    %c0_1 = arith.constant 0 : index
    %c0_2 = arith.constant 0 : index
    %1 = vector.load %arg2[%c0_1, %c0_2] : memref<128x32xbf16, #tpu.memory_space<vmem>>, vector<128x32xbf16>
    %cst = arith.constant dense<0.000000e+00> : vector<4x32xf32>
    %2 = tpu.matmul %0, %1, %cst {dimension_numbers = #tpu.dot_dimension_numbers<[1], [0], [0], [1], [0, 0, 1, 1], [], []>} : vector<4x128xbf16>, vector<128x32xbf16>, vector<4x32xf32> -> vector<4x32xf32>
    %cst_3 = arith.constant 0.000000e+00 : f32
    %3 = vector.broadcast %cst_3 : f32 to vector<4x32xf32>
    %4 = arith.maximumf %2, %3 : vector<4x32xf32>
    %c0_4 = arith.constant 0 : index
    %c0_5 = arith.constant 0 : index
    %5 = vector.load %arg3[%c0_4, %c0_5] : memref<4x32xf32, #tpu.memory_space<vmem>>, vector<4x32xf32>
    tpu.vector_store %arg3[%c0_4, %c0_5], %4 {strides = array<i32>} : memref<4x32xf32, #tpu.memory_space<vmem>>, vector<4x32xf32>,
    return
  }
  func.func @transform_0(%arg0: i32) -> (i32, i32) {
    %c0_i32 = arith.constant 0 : i32
    %c0_i32_0 = arith.constant 0 : i32
    return %arg0, %c0_i32 : i32, i32
  }
  func.func @transform_1(%arg0: i32) -> (i32, i32) {
    %c0_i32 = arith.constant 0 : i32
    %c0_i32_0 = arith.constant 0 : i32
    %c0_i32_1 = arith.constant 0 : i32
    return %c0_i32, %c0_i32_0 : i32, i32
  }
  func.func @transform_2(%arg0: i32) -> (i32, i32) {
    %c0_i32 = arith.constant 0 : i32
    %c0_i32_0 = arith.constant 0 : i32
    return %arg0, %c0_i32 : i32, i32
  }
}

</mosaic_0001>

<llo_original>
// kernel: gcn_forward.7
$region0: #{gcn_forward.7}
  #allocation0 [shape = 'u32[]', space=smem, size = 0x4, offset = 0x4, fixed_abs, tag = 'smem constant byte address 0x4 - core index']
  #allocation1 [shape = 'u32[144,128]{1,0:T(1,128)}', space=vmem, size = 0x12000, scoped, tag = 'internal scratch']
  %s0 = inlined_call_operand.vmem [shape: bf16[4,128], index: 0, kind: input, shape index: {}]
  %s1 = inlined_call_operand.vmem [shape: bf16[128,32], index: 1, kind: input, shape index: {}]
  %s2 = inlined_call_operand.hbm [shape: f32[4,32], index: 2, kind: output, shape index: {}]
  %s3 = sld [smem:[#allocation0]]
  $region18: #{gcn_forward.7} parent=0
    _
  %s5 = ssub.s32 1, %s3
  %s6 = scalar_select 0, %s5, %s3
  $region1: #{gcn_forward.7} parent=0
    #allocation2 [shape = 'u8[2048]{0}', space=vmem, size = 0x800, scoped, tag = 'output window, operand 0, single buffered']
    #allocation3 [shape = 's32[1]{0}', space=sflag, size = 0x4, scoped, tag = 'scoped memory for gcn_forward.7']
    %7 = vsyncpa [#allocation3], 0
    // Predicated region
    $region2: #{gcn_forward.7} parent=1 // pred_check
      _
    $region3: #{gcn_forward.7} parent=1 // pred_check_branch
      %9 = sbr.rel (0) target = $region5
    $region4: #{gcn_forward.7} parent=1 // pred_region
      _
    $region5: #{gcn_forward.7} parent=1 // pred_fallthru
      _
    // Predicated region
    $region6: #{gcn_forward.7} parent=1 // pred_check
      _
    $region7: #{gcn_forward.7} parent=1 // pred_check_branch
      %11 = sbr.rel (0) target = $region9
    $region8: #{gcn_forward.7} parent=1 // pred_region
      _
    $region9: #{gcn_forward.7} parent=1 // pred_fallthru
      _
    %v13 = vld [vmem:[%s0] sm:$0x3]
    %v14 = vld [vmem:[%s1] sm:$0xf]
    %v15 = vld [vmem:[%s1 + $0x4] sm:$0xf]
    %v16 = vld [vmem:[%s1 + $0x8] sm:$0xf]
    %v17 = vld [vmem:[%s1 + $0xc] sm:$0xf]
    %v18 = vld [vmem:[%s1 + $0x10] sm:$0xf]
    %v19 = vld [vmem:[%s1 + $0x14] sm:$0xf]
    %v20 = vld [vmem:[%s1 + $0x18] sm:$0xf]
    %v21 = vld [vmem:[%s1 + $0x1c] sm:$0xf]
    %v22 = vld [vmem:[%s1 + $0x20] sm:$0xf]
    %v23 = vld [vmem:[%s1 + $0x24] sm:$0xf]
    %v24 = vld [vmem:[%s1 + $0x28] sm:$0xf]
    %v25 = vld [vmem:[%s1 + $0x2c] sm:$0xf]
    %v26 = vld [vmem:[%s1 + $0x30] sm:$0xf]
    %v27 = vld [vmem:[%s1 + $0x34] sm:$0xf]
    %v28 = vld [vmem:[%s1 + $0x38] sm:$0xf]
    %v29 = vld [vmem:[%s1 + $0x3c] sm:$0xf]
    %v46 = vunpack.c.l.b16 %v14
    %v47 = vunpack.c.l.b16 %v15
    %v48 = vunpack.c.l.b16 %v16
    %v49 = vunpack.c.l.b16 %v17
    %v50 = vunpack.c.l.b16 %v18
    %v51 = vunpack.c.l.b16 %v19
    %v52 = vunpack.c.l.b16 %v20
    %v53 = vunpack.c.l.b16 %v21
    %v54 = vunpack.c.l.b16 %v22
    %v55 = vunpack.c.l.b16 %v23
    %v56 = vunpack.c.l.b16 %v24
    %v57 = vunpack.c.l.b16 %v25
    %v58 = vunpack.c.l.b16 %v26
    %v59 = vunpack.c.l.b16 %v27
    %v60 = vunpack.c.l.b16 %v28
    %v61 = vunpack.c.l.b16 %v29
    %v62 = vpack.c.b16 %v47, %v46
    %v63 = vpack.c.b16 %v49, %v48
    %v64 = vpack.c.b16 %v51, %v50
    %v65 = vpack.c.b16 %v53, %v52
    %v66 = vpack.c.b16 %v55, %v54
    %v67 = vpack.c.b16 %v57, %v56
    %v68 = vpack.c.b16 %v59, %v58
    %v69 = vpack.c.b16 %v61, %v60
    %78 = vmatprep.subr.bf16.mxu0 0
    %79 = vmatpush1.bf16.msra.mxu0 %v69
    %80 = vmatprep.subr.bf16.mxu0 0
    %81 = vmatpush1.bf16.msra.mxu0 %v68
    %82 = vmatprep.subr.bf16.mxu0 0
    %83 = vmatpush1.bf16.msra.mxu0 %v67
    %84 = vmatprep.subr.bf16.mxu0 0
    %85 = vmatpush1.bf16.msra.mxu0 %v66
    %86 = vmatprep.subr.bf16.mxu0 0
    %87 = vmatpush1.bf16.msra.mxu0 %v65
    %88 = vmatprep.subr.bf16.mxu0 0
    %89 = vmatpush1.bf16.msra.mxu0 %v64
    %90 = vmatprep.subr.bf16.mxu0 0
    %91 = vmatpush1.bf16.msra.mxu0 %v63
    %92 = vmatprep.subr.bf16.mxu0 0
    %93 = vmatpush1.bf16.msra.mxu0 %v62
    %94 = vmatprep.subr.bf16.mxu0 0
    %95 = vmatpush2.bf16.msra.mxu0 0
    %96 = vmatprep.subr.bf16.mxu0 0
    %97 = vmatpush2.bf16.msra.mxu0 0
    %98 = vmatprep.subr.bf16.mxu0 0
    %99 = vmatpush2.bf16.msra.mxu0 0
    %100 = vmatprep.subr.bf16.mxu0 0
    %101 = vmatpush2.bf16.msra.mxu0 0
    %102 = vmatprep.subr.bf16.mxu0 0
    %103 = vmatpush2.bf16.msra.mxu0 0
    %104 = vmatprep.subr.bf16.mxu0 0
    %105 = vmatpush2.bf16.msra.mxu0 0
    %106 = vmatprep.subr.bf16.mxu0 0
    %107 = vmatpush2.bf16.msra.mxu0 0
    %108 = vmatprep.subr.bf16.mxu0 0
    %109 = vmatpush2.bf16.msra.mxu0 0
    %110 = vmatprep.mubr.bf16.mxu0 0
    %111 = vmatmul.mubr.bf16.gmra.mxu0 %v13
    %v112 = vpop.f32.mrf.mxu0
    %v113 = vadd.f32 0.0, %v112
    %v114 = vpop.f32.mrf.mxu0
    %v115 = vpop.f32.mrf.mxu0
    %v116 = vpop.f32.mrf.mxu0
    %117 = vdwg.mxu0
    %v118 = vmax.f32 %v113, 0.0
    %vm119 = vcmask 257024
    %120 = vst.msk [vmem:[#allocation2] sm:$0xf] %vm119, %v118
    // Predicated region
    $region10: #{gcn_forward.7} parent=1 // pred_check
      _
    $region11: #{gcn_forward.7} parent=1 // pred_check_branch
      %122 = sbr.rel (0) target = $region13
    $region12: #{gcn_forward.7} parent=1 // pred_region
      %s124 = ssub.s32 64, 64
      %125 = vsyncadd [#allocation3], %s124
      %s127 = sshll.u32 [#allocation2], 4
      %s128 = int_to_ptr.vmem [resolvable:$true] %s127
      %130 = dma.vmem_to_hbm [thread:$0]  %s128, 64, %s2, [#allocation3]
    $region13: #{gcn_forward.7} parent=1 // pred_fallthru
      _
    // Predicated region
    $region14: #{gcn_forward.7} parent=1 // pred_check
      _
    $region15: #{gcn_forward.7} parent=1 // pred_check_branch
      %132 = sbr.rel (0) target = $region17
    $region16: #{gcn_forward.7} parent=1 // pred_region
      %133 = dma.done [#allocation3], 64
    $region17: #{gcn_forward.7} parent=1 // pred_fallthru
      _
    %134 = vsyncpa [#allocation3], 1

// kernel: gcn_forward.5
$region0: #{gcn_forward.5}
  #allocation0 [shape = 'u32[]', space=smem, size = 0x4, offset = 0x4, fixed_abs, tag = 'smem constant byte address 0x4 - core index']
  #allocation1 [shape = 'u32[144,128]{1,0:T(1,128)}', space=vmem, size = 0x12000, scoped, tag = 'internal scratch']
  %s0 = inlined_call_operand.vmem [shape: bf16[36,40], index: 0, kind: input, shape index: {}]
  %s1 = inlined_call_operand.vmem [shape: bf16[40,64], index: 1, kind: input, shape index: {}]
  %s2 = inlined_call_operand.vmem [shape: f32[36,64], index: 2, kind: output, shape index: {}]
  %s3 = sld [smem:[#allocation0]]
  $region89: #{gcn_forward.5} parent=0
    _
  %s5 = ssub.s32 1, %s3
  %s6 = scalar_select 0, %s5, %s3
  $region1: #{gcn_forward.5} parent=0
    #allocation2 [shape = 'u8[32768]{0}', space=vmem, size = 0x8000, scoped, tag = 'output window, operand 0']
    loop: start=0, step=1, limit=4
    $region2: #{gcn_forward.5} parent=1 // loop_pre_header
      _
    $region3: #{gcn_forward.5} parent=1 // loop_header
      %s8 = sphi 0, %s12
      %p9 = scmp.ge.s32.totalorder %s8, 4
      %s18 = sphi 0, %s20
      %s21 = sphi 0, %s18
      %s22 = sphi 0, %s21
      %s38 = sphi 0, %s22
      %s42 = sphi 0, %s42
      %s44 = sphi 0, %s42
      %s45 = sphi 0, %s44
      %s59 = sphi 0, %s45
      %s65 = sphi 0, %s67
      %s68 = sphi 0, %s65
      %s69 = sphi 0, %s68
      %s85 = sphi 0, %s69
    $region4: #{gcn_forward.5} parent=1 // loop_header_branch
      %11 = sbr.rel (%p9) target = $region8
    $region5: #{gcn_forward.5} parent=1 // loop_body
      %s13 = ssub.s32 %s8, 1
      %s14 = ssub.s32 %s8, 2
      %s15 = sadd.s32 %s8, 1
      %s16 = ssub.s32 %s8, %s15
      %p17 = scmp.eq.s32.totalorder %s16, 0
      %s19 = sadd.s32 %s18, 1
      %s20 = scalar_select %p17, %s18, %s19
      %p23 = pneg %p17
      %p24 = scmp.eq.s32.totalorder %s8, 1
      %p25 = por %p23, %p24
      %p26 = scmp.ne.s32.totalorder %s18, %s21
      %p27 = scmp.eq.s32.totalorder %s8, 0
      %p28 = por %p26, %p27
      %p29 = scmp.ne.s32.totalorder %s18, %s21
      %p30 = scmp.eq.s32.totalorder %s13, 1
      %p31 = por %p29, %p30
      %p32 = scmp.ne.s32.totalorder %s21, %s22
      %p33 = scmp.eq.s32.totalorder %s13, 0
      %p34 = por %p32, %p33
      %p35 = scmp.ne.s32.totalorder %s21, %s22
      %p36 = scmp.eq.s32.totalorder %s14, 1
      %p37 = por %p35, %p36
      %p39 = scmp.ne.s32.totalorder %s22, %s38
      %p40 = scmp.eq.s32.totalorder %s14, 0
      %p41 = por %p39, %p40
      %s43 = sadd.s32 %s42, 1
      %p46 = scmp.eq.s32.totalorder %s8, 1
      %p47 = scmp.ne.s32.totalorder %s42, %s44
      %p48 = scmp.eq.s32.totalorder %s8, 0
      %p49 = por %p47, %p48
      %p50 = scmp.ne.s32.totalorder %s42, %s44
      %p51 = scmp.eq.s32.totalorder %s13, 1
      %p52 = por %p50, %p51
      %p53 = scmp.ne.s32.totalorder %s44, %s45
      %p54 = scmp.eq.s32.totalorder %s13, 0
      %p55 = por %p53, %p54
      %p56 = scmp.ne.s32.totalorder %s44, %s45
      %p57 = scmp.eq.s32.totalorder %s14, 1
      %p58 = por %p56, %p57
      %p60 = scmp.ne.s32.totalorder %s45, %s59
      %p61 = scmp.eq.s32.totalorder %s14, 0
      %p62 = por %p60, %p61
      %s63 = ssub.s32 %s8, %s15
      %p64 = scmp.eq.s32.totalorder %s63, 0
      %s66 = sadd.s32 %s65, 1
      %s67 = scalar_select %p64, %s65, %s66
      %p70 = pneg %p64
      %p71 = scmp.eq.s32.totalorder %s8, 1
      %p72 = por %p70, %p71
      %p73 = scmp.ne.s32.totalorder %s65, %s68
      %p74 = scmp.eq.s32.totalorder %s8, 0
      %p75 = por %p73, %p74
      %p76 = scmp.ne.s32.totalorder %s65, %s68
      %p77 = scmp.eq.s32.totalorder %s13, 1
      %p78 = por %p76, %p77
      %p79 = scmp.ne.s32.totalorder %s68, %s69
      %p80 = scmp.eq.s32.totalorder %s13, 0
      %p81 = por %p79, %p80
      %p82 = scmp.ne.s32.totalorder %s68, %s69
      %p83 = scmp.eq.s32.totalorder %s14, 1
      %p84 = por %p82, %p83
      %p86 = scmp.ne.s32.totalorder %s69, %s85
      %p87 = scmp.eq.s32.totalorder %s14, 0
      %p88 = por %p86, %p87
      %p89 = scmp.le.s32.totalorder 1, %s8
      %p90 = scmp.lt.s32.totalorder %s8, 3
      %p91 = pnand %p89, %p90
      %p92 = pneg %p91
      // Predicated region
      $region9: #{gcn_forward.5} parent=5 // pred_check
        _
      $region10: #{gcn_forward.5} parent=5 // pred_check_branch
        %94 = sbr.rel (%p91) target = $region12
      $region11: #{gcn_forward.5} parent=5 // pred_region
        %s95 = ssub.s32 %s8, 1
        // Predicated region
        $region13: #{gcn_forward.5} parent=11 // pred_check
          %p96 = pneg %p55
        $region14: #{gcn_forward.5} parent=11 // pred_check_branch
          %98 = sbr.rel (%p96) target = $region16
        $region15: #{gcn_forward.5} parent=11 // pred_region
          _
        $region16: #{gcn_forward.5} parent=11 // pred_fallthru
          _
      $region12: #{gcn_forward.5} parent=5 // pred_fallthru
        _
      %p99 = scmp.lt.s32.totalorder %s8, 2
      // Predicated region
      $region17: #{gcn_forward.5} parent=5 // pred_check
        %p100 = pneg %p99
      $region18: #{gcn_forward.5} parent=5 // pred_check_branch
        %102 = sbr.rel (%p100) target = $region20
      $region19: #{gcn_forward.5} parent=5 // pred_region
        // Predicated region
        $region21: #{gcn_forward.5} parent=19 // pred_check
          %p103 = pneg %p28
        $region22: #{gcn_forward.5} parent=19 // pred_check_branch
          %105 = sbr.rel (%p103) target = $region24
        $region23: #{gcn_forward.5} parent=19 // pred_region
          %s106 = smul.u32 4, %s8
          %s107 = ssub.s32 5, %s106
          %p108 = scmp.lt.s32.totalorder %s107, 4
          %s109 = scalar_select %p108, %s107, 4
          %s110 = smul.u32 64, %s109
          %p111 = scmp.lt.s32.totalorder %s106, 4
          %s112 = scalar_select %p111, %s106, 4
          %s113 = smul.addr %s112, 4
          %s114 = scalar_lea.vmem %s0, %s113
          %s115 = smul.u32 4, %s8
          %s116 = ssub.s32 5, %s115
          %p117 = scmp.lt.s32.totalorder %s116, 4
          %s118 = scalar_select %p117, %s116, 4
          %s119 = smul.u32 64, %s118
        $region24: #{gcn_forward.5} parent=19 // pred_fallthru
          _
      $region20: #{gcn_forward.5} parent=5 // pred_fallthru
        _
      %p120 = scmp.le.s32.totalorder 1, %s8
      %p121 = scmp.lt.s32.totalorder %s8, 3
      %p122 = pnand %p120, %p121
      %p123 = pneg %p122
      // Predicated region
      $region25: #{gcn_forward.5} parent=5 // pred_check
        _
      $region26: #{gcn_forward.5} parent=5 // pred_check_branch
        %125 = sbr.rel (%p122) target = $region28
      $region27: #{gcn_forward.5} parent=5 // pred_region
        %s126 = ssub.s32 %s8, 1
        %s127 = smul.u32 4, %s13
        %s128 = ssub.s32 5, %s127
        %p129 = scmp.lt.s32.totalorder %s128, 4
        %s130 = scalar_select %p129, %s128, 4
        %s131 = smul.u32 64, %s130
        %p132 = scmp.lt.s32.totalorder %s127, 4
        %s133 = scalar_select %p132, %s127, 4
        %s134 = smul.addr %s133, 4
        %s135 = scalar_lea.vmem %s0, %s134
        %p136 = pneg %p34
        %p137 = pneg %p31
        %p138 = pneg %p55
        %p139 = pneg %p52
        %p140 = pneg %p81
        %p141 = pneg %p78
        %s142 = sand.u32 %s68, 1
        %s143 = sand.u32 %s68, 1
        %s144 = smul.addr %s143, 32
        %s145 = scalar_lea.vmem [#allocation2], %s144
        %s146 = smul.u32 4, %s13
        %s147 = ssub.s32 5, %s146
        %p148 = scmp.lt.s32.totalorder %s147, 4
        %s149 = scalar_select %p148, %s147, 4
        %s150 = smul.u32 64, %s149
        %p151 = scmp.lt.s32.totalorder %s146, 4
        %s152 = scalar_select %p151, %s146, 4
        %s153 = smul.addr %s152, 4
        %s154 = scalar_lea.vmem %s0, %s153
        %s155 = smul.u32 4, %s13
        %s156 = ssub.s32 5, %s155
        %p157 = scmp.lt.s32.totalorder %s156, 4
        %s158 = scalar_select %p157, %s156, 4
        %s159 = smul.u32 64, %s158
        %s160 = smul.u32 4, %s13
        %s161 = ssub.s32 5, %s160
        %p162 = scmp.lt.s32.totalorder %s161, 4
        %s163 = scalar_select %p162, %s161, 4
        %s164 = smul.u32 128, %s163
        %v166 = vld [vmem:[%s154] sm:$0xf]
        %v167 = vld [vmem:[%s154 + $0x4] sm:$0xf]
        %v168 = vld [vmem:[%s154 + $0x8] sm:$0xf]
        %v169 = vld [vmem:[%s154 + $0xc] sm:$0xf]
        %v170 = vld [vmem:[%s1] sm:$0xf]
        %v171 = vld [vmem:[%s1 + $0x4] sm:$0xf]
        %v172 = vld [vmem:[%s1 + $0x8] sm:$0xf]
        %v173 = vld [vmem:[%s1 + $0xc] sm:$0xf]
        %v174 = vld [vmem:[%s1 + $0x10] sm:$0xf]
        %v179 = vunpack.c.l.b16 %v166
        %v180 = vunpack.c.l.b16 %v167
        %v181 = vunpack.c.l.b16 %v168
        %v182 = vunpack.c.l.b16 %v169
        %v183 = vpack.c.b16 %v180, %v179
        %v184 = vpack.c.b16 %v182, %v181
        %v190 = vunpack.c.l.b16 %v170
        %v191 = vunpack.c.l.b16 %v171
        %v192 = vunpack.c.l.b16 %v172
        %v193 = vunpack.c.l.b16 %v173
        %v194 = vunpack.c.l.b16 %v174
        %v195 = vpack.c.b16 %v191, %v190
        %v196 = vpack.c.b16 %v193, %v192
        %v197 = vpack.c.b16 %v194, %v194
        %vm200 = vcmask 326656
        %v202 = vsel %vm200, %v183, 0
        %v205 = vsel %vm200, %v184, 0
        %vm207 = vcmask 1043456
        %v209 = vsel %vm207, %v197, 0
        %211 = vmatprep.subr.bf16.mxu0 0
        %212 = vmatpush1.bf16.msra.mxu0 0
        %213 = vmatprep.subr.bf16.mxu0 0
        %214 = vmatpush1.bf16.msra.mxu0 0
        %215 = vmatprep.subr.bf16.mxu0 0
        %216 = vmatpush1.bf16.msra.mxu0 0
        %217 = vmatprep.subr.bf16.mxu0 0
        %218 = vmatpush1.bf16.msra.mxu0 0
        %219 = vmatprep.subr.bf16.mxu0 0
        %220 = vmatpush1.bf16.msra.mxu0 0
        %221 = vmatprep.subr.bf16.mxu0 0
        %222 = vmatpush1.bf16.msra.mxu0 %v209
        %223 = vmatprep.subr.bf16.mxu0 0
        %224 = vmatpush1.bf16.msra.mxu0 %v196
        %225 = vmatprep.subr.bf16.mxu0 0
        %226 = vmatpush1.bf16.msra.mxu0 %v195
        %227 = vmatprep.subr.bf16.mxu0 0
        %228 = vmatpush2.bf16.msra.mxu0 0
        %229 = vmatprep.subr.bf16.mxu0 0
        %230 = vmatpush2.bf16.msra.mxu0 0
        %231 = vmatprep.subr.bf16.mxu0 0
        %232 = vmatpush2.bf16.msra.mxu0 0
        %233 = vmatprep.subr.bf16.mxu0 0
        %234 = vmatpush2.bf16.msra.mxu0 0
        %235 = vmatprep.subr.bf16.mxu0 0
        %236 = vmatpush2.bf16.msra.mxu0 0
        %237 = vmatprep.subr.bf16.mxu0 0
        %238 = vmatpush2.bf16.msra.mxu0 0
        %239 = vmatprep.subr.bf16.mxu0 0
        %240 = vmatpush2.bf16.msra.mxu0 0
        %241 = vmatprep.subr.bf16.mxu0 0
        %242 = vmatpush2.bf16.msra.mxu0 0
        %243 = vmatprep.mubr.bf16.mxu0 0
        %244 = vmatmul.mubr.bf16.gmra.mxu0 %v202
        %v245 = vpop.f32.mrf.mxu0
        %v246 = vadd.f32 0.0, %v245
        %v247 = vpop.f32.mrf.mxu0
        %v248 = vpop.f32.mrf.mxu0
        %v249 = vadd.f32 0.0, %v248
        %v250 = vpop.f32.mrf.mxu0
        %251 = vmatprep.mubr.bf16.mxu0 0
        %252 = vmatmul.mubr.bf16.gmra.mxu0 %v205
        %v253 = vpop.f32.mrf.mxu0
        %v254 = vadd.f32 0.0, %v253
        %v255 = vpop.f32.mrf.mxu0
        %v256 = vpop.f32.mrf.mxu0
        %v257 = vadd.f32 0.0, %v256
        %v258 = vpop.f32.mrf.mxu0
        %259 = vdwg.mxu0
        %v260 = vmax.f32 %v246, 0.0
        %v261 = vmax.f32 %v249, 0.0
        %v262 = vmax.f32 %v254, 0.0
        %v263 = vmax.f32 %v257, 0.0
        %vm264 = vcmask 523264
        %265 = vst.msk [vmem:[%s145] sm:$0xff] %vm264, %v260
        %266 = vst.msk [vmem:[%s145 + $0x8] sm:$0xff] %vm264, %v261
        %267 = vst.msk [vmem:[%s145 + $0x10] sm:$0xff] %vm264, %v262
        %268 = vst.msk [vmem:[%s145 + $0x18] sm:$0xff] %vm264, %v263
        %s269 = sand.u32 %s68, 1
        %s270 = sand.u32 %s68, 1
        %s271 = smul.addr %s270, 32
        %s272 = scalar_lea.vmem [#allocation2], %s271
        // Predicated region
        $region29: #{gcn_forward.5} parent=27 // pred_check
          %p273 = pneg %p78
        $region30: #{gcn_forward.5} parent=27 // pred_check_branch
          %275 = sbr.rel (%p273) target = $region32
        $region31: #{gcn_forward.5} parent=27 // pred_region
          %s276 = smul.u32 4, %s13
          %s277 = ssub.s32 5, %s276
          %p278 = scmp.lt.s32.totalorder %s277, 4
          %s279 = scalar_select %p278, %s277, 4
          %s280 = smul.u32 128, %s279
          %p281 = scmp.ne.s32.totalorder 0, %s280
          %s282 = smul.addr %s276, 8
          %s283 = scalar_lea.vmem %s2, %s282
          // Predicated region
          $region33: #{gcn_forward.5} parent=31 // pred_check
            %p284 = pneg %p281
          $region34: #{gcn_forward.5} parent=31 // pred_check_branch
            %286 = sbr.rel (%p284) target = $region36
          $region35: #{gcn_forward.5} parent=31 // pred_region
            // Predicated region
            $region37: #{gcn_forward.5} parent=35 // pred_check
              _
            $region38: #{gcn_forward.5} parent=35 // pred_check_branch
              %288 = sbr.rel (0) target = $region40
            $region39: #{gcn_forward.5} parent=35 // pred_region
              // Predicated region
              $region59: #{gcn_forward.5} parent=39 // pred_check
                _
              $region60: #{gcn_forward.5} parent=39 // pred_check_branch
                %344 = sbr.rel (0) target = $region62
              $region61: #{gcn_forward.5} parent=39 // pred_region
                %s345 = sshrl.u32 %s279, 2
                // While loop
                $region63: #{gcn_forward.5} parent=61 // loop_pre_header
                  _
                $region64: #{gcn_forward.5} parent=61 // loop_header
                  %s347 = sphi 0, %s349
                  %p348 = scmp.ge.s32.totalorder %s347, %s345
                  %s352 = sphi 0, %s365
                  %s353 = sphi %s272, %s368
                  %s354 = sphi %s283, %s369
                $region65: #{gcn_forward.5} parent=61 // loop_header_branch
                  %351 = sbr.rel (%p348) target = $region69
                $region66: #{gcn_forward.5} parent=61 // loop_body
                  %v355 = vld [vmem:[%s353] sm:$0xff]
                  %356 = vst [vmem:[%s354] sm:$0xff] %v355
                  %v357 = vld [vmem:[%s353 + $0x8] sm:$0xff]
                  %358 = vst [vmem:[%s354 + $0x8] sm:$0xff] %v357
                  %v359 = vld [vmem:[%s353 + $0x10] sm:$0xff]
                  %360 = vst [vmem:[%s354 + $0x10] sm:$0xff] %v359
                  %v361 = vld [vmem:[%s353 + $0x18] sm:$0xff]
                  %362 = vst [vmem:[%s354 + $0x18] sm:$0xff] %v361
                  %s363 = sadd.s32 1, %s352
                  %p364 = scmp.ge.s32.totalorder %s363, %s345
                  %s365 = scalar_select %p364, 0, %s363
                  %s366 = smul.u32 %s365, 32
                  %s367 = smul.u32 %s365, 32
                  %s368 = scalar_lea.vmem %s272, %s366 [#allocation2]
                  %s369 = scalar_lea.vmem %s283, %s367
                $region67: #{gcn_forward.5} parent=61 // loop_footer
                  %s349 = sadd.s32 %s347, 1
                $region68: #{gcn_forward.5} parent=61 // loop_footer_branch
                  %346 = sbr.rel target = $region64
                $region69: #{gcn_forward.5} parent=61 // loop_exit
                  _
                %s370 = sshrl.u32 %s279, 2
                %s371 = sand.u32 %s279, 3
                %s372 = smul.u32 %s370, 4
                %s373 = smul.u32 8, %s372
                %s374 = scalar_lea.vmem %s272, %s373 [#allocation2]
                %s375 = smul.u32 8, %s372
                %s376 = scalar_lea.vmem %s283, %s375
                // While loop
                $region70: #{gcn_forward.5} parent=61 // loop_pre_header
                  _
                $region71: #{gcn_forward.5} parent=61 // loop_header
                  %s378 = sphi 0, %s380
                  %p379 = scmp.ge.s32.totalorder %s378, %s371
                  %s383 = sphi 0, %s390
                  %s384 = sphi %s374, %s393
                  %s385 = sphi %s376, %s394
                $region72: #{gcn_forward.5} parent=61 // loop_header_branch
                  %382 = sbr.rel (%p379) target = $region76
                $region73: #{gcn_forward.5} parent=61 // loop_body
                  %v386 = vld [vmem:[%s384] sm:$0xff]
                  %387 = vst [vmem:[%s385] sm:$0xff] %v386
                  %s388 = sadd.s32 1, %s383
                  %p389 = scmp.ge.s32.totalorder %s388, %s371
                  %s390 = scalar_select %p389, 0, %s388
                  %s391 = smul.u32 %s390, 8
                  %s392 = smul.u32 %s390, 8
                  %s393 = scalar_lea.vmem %s374, %s391 [#allocation2]
                  %s394 = scalar_lea.vmem %s376, %s392
                $region74: #{gcn_forward.5} parent=61 // loop_footer
                  %s380 = sadd.s32 %s378, 1
                $region75: #{gcn_forward.5} parent=61 // loop_footer_branch
                  %377 = sbr.rel target = $region71
                $region76: #{gcn_forward.5} parent=61 // loop_exit
                  _
              $region62: #{gcn_forward.5} parent=39 // pred_fallthru
                _
              // Predicated region
              $region77: #{gcn_forward.5} parent=39 // pred_check
                _
              $region78: #{gcn_forward.5} parent=39 // pred_check_branch
                %396 = sbr.rel target = $region80
              $region79: #{gcn_forward.5} parent=39 // pred_region
                _
              $region80: #{gcn_forward.5} parent=39 // pred_fallthru
                _
            $region40: #{gcn_forward.5} parent=35 // pred_fallthru
              _
            // Predicated region
            $region41: #{gcn_forward.5} parent=35 // pred_check
              _
            $region42: #{gcn_forward.5} parent=35 // pred_check_branch
              %290 = sbr.rel target = $region44
            $region43: #{gcn_forward.5} parent=35 // pred_region
              %s292 = ssub.s32 256, 1
              %s293 = sshrl.u32 %s279, 2
              // While loop
              $region45: #{gcn_forward.5} parent=43 // loop_pre_header
                _
              $region46: #{gcn_forward.5} parent=43 // loop_header
                %s295 = sphi 0, %s297
                %p296 = scmp.ge.s32.totalorder %s295, %s293
                %s300 = sphi 0, %s313
                %s301 = sphi %s272, %s316
                %s302 = sphi %s283, %s317
              $region47: #{gcn_forward.5} parent=43 // loop_header_branch
                %299 = sbr.rel (%p296) target = $region51
              $region48: #{gcn_forward.5} parent=43 // loop_body
                %v303 = vld [vmem:[%s301] sm:%s292]
                %304 = vst [vmem:[%s302] sm:%s292] %v303
                %v305 = vld [vmem:[%s301 + $0x8] sm:%s292]
                %306 = vst [vmem:[%s302 + $0x8] sm:%s292] %v305
                %v307 = vld [vmem:[%s301 + $0x10] sm:%s292]
                %308 = vst [vmem:[%s302 + $0x10] sm:%s292] %v307
                %v309 = vld [vmem:[%s301 + $0x18] sm:%s292]
                %310 = vst [vmem:[%s302 + $0x18] sm:%s292] %v309
                %s311 = sadd.s32 1, %s300
                %p312 = scmp.ge.s32.totalorder %s311, %s293
                %s313 = scalar_select %p312, 0, %s311
                %s314 = smul.u32 %s313, 32
                %s315 = smul.u32 %s313, 32
                %s316 = scalar_lea.vmem %s272, %s314 [#allocation2]
                %s317 = scalar_lea.vmem %s283, %s315
              $region49: #{gcn_forward.5} parent=43 // loop_footer
                %s297 = sadd.s32 %s295, 1
              $region50: #{gcn_forward.5} parent=43 // loop_footer_branch
                %294 = sbr.rel target = $region46
              $region51: #{gcn_forward.5} parent=43 // loop_exit
                _
              %s318 = sshrl.u32 %s279, 2
              %s319 = sand.u32 %s279, 3
              %s320 = smul.u32 %s318, 4
              %s321 = smul.u32 8, %s320
              %s322 = scalar_lea.vmem %s272, %s321 [#allocation2]
              %s323 = smul.u32 8, %s320
              %s324 = scalar_lea.vmem %s283, %s323
              // While loop
              $region52: #{gcn_forward.5} parent=43 // loop_pre_header
                _
              $region53: #{gcn_forward.5} parent=43 // loop_header
                %s326 = sphi 0, %s328
                %p327 = scmp.ge.s32.totalorder %s326, %s319
                %s331 = sphi 0, %s338
                %s332 = sphi %s322, %s341
                %s333 = sphi %s324, %s342
              $region54: #{gcn_forward.5} parent=43 // loop_header_branch
                %330 = sbr.rel (%p327) target = $region58
              $region55: #{gcn_forward.5} parent=43 // loop_body
                %v334 = vld [vmem:[%s332] sm:%s292]
                %335 = vst [vmem:[%s333] sm:%s292] %v334
                %s336 = sadd.s32 1, %s331
                %p337 = scmp.ge.s32.totalorder %s336, %s319
                %s338 = scalar_select %p337, 0, %s336
                %s339 = smul.u32 %s338, 8
                %s340 = smul.u32 %s338, 8
                %s341 = scalar_lea.vmem %s322, %s339 [#allocation2]
                %s342 = scalar_lea.vmem %s324, %s340
              $region56: #{gcn_forward.5} parent=43 // loop_footer
                %s328 = sadd.s32 %s326, 1
              $region57: #{gcn_forward.5} parent=43 // loop_footer_branch
                %325 = sbr.rel target = $region53
              $region58: #{gcn_forward.5} parent=43 // loop_exit
                _
            $region44: #{gcn_forward.5} parent=35 // pred_fallthru
              _
          $region36: #{gcn_forward.5} parent=31 // pred_fallthru
            _
          %397 = vnop
        $region32: #{gcn_forward.5} parent=27 // pred_fallthru
          _
      $region28: #{gcn_forward.5} parent=5 // pred_fallthru
        _
      %p398 = scmp.le.s32.totalorder 2, %s8
      // Predicated region
      $region81: #{gcn_forward.5} parent=5 // pred_check
        %p399 = pneg %p398
      $region82: #{gcn_forward.5} parent=5 // pred_check_branch
        %401 = sbr.rel (%p399) target = $region84
      $region83: #{gcn_forward.5} parent=5 // pred_region
        %s402 = ssub.s32 %s8, 2
        // Predicated region
        $region85: #{gcn_forward.5} parent=83 // pred_check
          %p403 = pneg %p84
        $region86: #{gcn_forward.5} parent=83 // pred_check_branch
          %405 = sbr.rel (%p403) target = $region88
        $region87: #{gcn_forward.5} parent=83 // pred_region
          %s406 = sand.u32 %s69, 1
          %s407 = sand.u32 %s69, 1
          %s408 = smul.addr %s407, 32
          %s409 = scalar_lea.vmem [#allocation2], %s408
        $region88: #{gcn_forward.5} parent=83 // pred_fallthru
          _
      $region84: #{gcn_forward.5} parent=5 // pred_fallthru
        _
    $region6: #{gcn_forward.5} parent=1 // loop_footer
      %s12 = sadd.s32 1, %s8
    $region7: #{gcn_forward.5} parent=1 // loop_footer_branch
      %7 = sbr.rel target = $region3
    $region8: #{gcn_forward.5} parent=1 // loop_exit
      _

</llo_original>
